<compile_context>
chip_gen: v6e
topology: v6e:2x2x1
jax: 0.10.0
libtpu: 0.0.40
codegen_flags: <defaults>
</compile_context>

<pallas_src>
import math
from functools import partial

import numpy as np
import jax
import jax.numpy as jnp
from jax import lax
from jax.experimental import pallas as pl
from jax.experimental.pallas import tpu as pltpu

TILE_M = 512          # generic row tile (memory-bound linears / LN)
TILE_HEAVY = 256      # row tile for kernels with large hidden dims (ConvNeXt MLP)
VMEM_LIMIT = 48 * 1024 * 1024
NUM_HEADS = 8
FEAT_DIM = 256
NUM_COMM_ENC = [0, 1, 2, 4]
POOL_SCALES = (1, 2, 3, 6)
CONVNEXT_DEPTHS = (3, 3, 9, 3)
CONVNEXT_DIMS = (96, 192, 384, 768)


def _cparams(*sem):
    return pltpu.CompilerParams(dimension_semantics=sem,
                                vmem_limit_bytes=VMEM_LIMIT)


def _row_tile(M, tile=TILE_M):
    return tile if M >= tile else max(M, 1)


# ---------------------------------------------------------------------------
# Pallas kernels
# ---------------------------------------------------------------------------
def _linear_kernel(x_ref, w_ref, b_ref, o_ref, *, relu):
    acc = jnp.dot(x_ref[...].astype(jnp.bfloat16), w_ref[...],
                  preferred_element_type=jnp.float32) + b_ref[...]
    if relu:
        acc = jnp.maximum(acc, 0.0)
    o_ref[...] = acc.astype(o_ref.dtype)


def pallas_linear(x, w, b, relu=False):
    """y = x @ w + b (+ optional ReLU). x: [..., K], w: [K, N] bf16, b: [N]."""
    orig_shape = x.shape
    K = orig_shape[-1]
    N = w.shape[1]
    x2 = x.reshape(-1, K)
    M = x2.shape[0]
    if M == 0:
        return jnp.zeros(orig_shape[:-1] + (N,), jnp.float32)
    tm = _row_tile(M)
    out = pl.pallas_call(
        partial(_linear_kernel, relu=relu),
        out_shape=jax.ShapeDtypeStruct((M, N), jnp.float32),
        grid=(pl.cdiv(M, tm),),
        in_specs=[
            pl.BlockSpec((tm, K), lambda i: (i, 0)),
            pl.BlockSpec((K, N), lambda i: (0, 0)),
            pl.BlockSpec((1, N), lambda i: (0, 0)),
        ],
        out_specs=pl.BlockSpec((tm, N), lambda i: (i, 0)),
        compiler_params=_cparams("parallel"),
    )(x2, w.astype(jnp.bfloat16), b.reshape(1, N).astype(jnp.float32))
    return out.reshape(orig_shape[:-1] + (N,))


def _mlp_head_kernel(x_ref, w1_ref, b1_ref, w2_ref, b2_ref, o_ref):
    h = jnp.dot(x_ref[...].astype(jnp.bfloat16), w1_ref[...],
                preferred_element_type=jnp.float32) + b1_ref[...]
    h = jnp.maximum(h, 0.0)
    y = jnp.dot(h.astype(jnp.bfloat16), w2_ref[...],
                preferred_element_type=jnp.float32) + b2_ref[...]
    o_ref[...] = y.astype(o_ref.dtype)


def pallas_mlp_head(x, w1, b1, w2, b2):
    """Fused Linear -> ReLU -> Linear with the hidden kept in VMEM."""
    orig_shape = x.shape
    D = orig_shape[-1]
    F = w1.shape[1]
    N = w2.shape[1]
    x2 = x.reshape(-1, D)
    M = x2.shape[0]
    if M == 0:
        return jnp.zeros(orig_shape[:-1] + (N,), jnp.float32)
    tm = _row_tile(M)
    out = pl.pallas_call(
        _mlp_head_kernel,
        out_shape=jax.ShapeDtypeStruct((M, N), jnp.float32),
        grid=(pl.cdiv(M, tm),),
        in_specs=[
            pl.BlockSpec((tm, D), lambda i: (i, 0)),
            pl.BlockSpec((D, F), lambda i: (0, 0)),
            pl.BlockSpec((1, F), lambda i: (0, 0)),
            pl.BlockSpec((F, N), lambda i: (0, 0)),
            pl.BlockSpec((1, N), lambda i: (0, 0)),
        ],
        out_specs=pl.BlockSpec((tm, N), lambda i: (i, 0)),
        compiler_params=_cparams("parallel"),
    )(x2, w1.astype(jnp.bfloat16), b1.reshape(1, F).astype(jnp.float32),
      w2.astype(jnp.bfloat16), b2.reshape(1, N).astype(jnp.float32))
    return out.reshape(orig_shape[:-1] + (N,))


def _layernorm_kernel(x_ref, g_ref, b_ref, o_ref, *, eps):
    x = x_ref[...].astype(jnp.float32)
    mu = jnp.mean(x, axis=-1, keepdims=True)
    var = jnp.mean(jnp.square(x - mu), axis=-1, keepdims=True)
    y = (x - mu) * lax.rsqrt(var + eps)
    o_ref[...] = (y * g_ref[...] + b_ref[...]).astype(o_ref.dtype)


def pallas_layernorm(x, g, b, eps=1e-5):
    orig_shape = x.shape
    D = orig_shape[-1]
    x2 = x.reshape(-1, D)
    M = x2.shape[0]
    tm = _row_tile(M)
    out = pl.pallas_call(
        partial(_layernorm_kernel, eps=eps),
        out_shape=jax.ShapeDtypeStruct((M, D), jnp.float32),
        grid=(pl.cdiv(M, tm),),
        in_specs=[
            pl.BlockSpec((tm, D), lambda i: (i, 0)),
            pl.BlockSpec((1, D), lambda i: (0, 0)),
            pl.BlockSpec((1, D), lambda i: (0, 0)),
        ],
        out_specs=pl.BlockSpec((tm, D), lambda i: (i, 0)),
        compiler_params=_cparams("parallel"),
    )(x2, g.reshape(1, D).astype(jnp.float32), b.reshape(1, D).astype(jnp.float32))
    return out.reshape(orig_shape)


def _add_ln_kernel(x_ref, y_ref, g_ref, b_ref, o_ref, *, eps):
    x = x_ref[...].astype(jnp.float32) + y_ref[...].astype(jnp.float32)
    mu = jnp.mean(x, axis=-1, keepdims=True)
    var = jnp.mean(jnp.square(x - mu), axis=-1, keepdims=True)
    o_ref[...] = ((x - mu) * lax.rsqrt(var + eps) * g_ref[...]
                  + b_ref[...]).astype(o_ref.dtype)


def pallas_add_ln(x, y, g, b, eps=1e-5):
    """LayerNorm(x + y) fused."""
    orig_shape = x.shape
    D = orig_shape[-1]
    x2 = x.reshape(-1, D)
    y2 = y.reshape(-1, D)
    M = x2.shape[0]
    tm = _row_tile(M)
    out = pl.pallas_call(
        partial(_add_ln_kernel, eps=eps),
        out_shape=jax.ShapeDtypeStruct((M, D), jnp.float32),
        grid=(pl.cdiv(M, tm),),
        in_specs=[
            pl.BlockSpec((tm, D), lambda i: (i, 0)),
            pl.BlockSpec((tm, D), lambda i: (i, 0)),
            pl.BlockSpec((1, D), lambda i: (0, 0)),
            pl.BlockSpec((1, D), lambda i: (0, 0)),
        ],
        out_specs=pl.BlockSpec((tm, D), lambda i: (i, 0)),
        compiler_params=_cparams("parallel"),
    )(x2, y2, g.reshape(1, D).astype(jnp.float32), b.reshape(1, D).astype(jnp.float32))
    return out.reshape(orig_shape)


def _ffn_res_ln_kernel(x_ref, w1_ref, b1_ref, w2_ref, b2_ref, g_ref, b_ref,
                       o_ref, *, eps):
    x = x_ref[...].astype(jnp.float32)
    h = jnp.dot(x.astype(jnp.bfloat16), w1_ref[...],
                preferred_element_type=jnp.float32) + b1_ref[...]
    h = jnp.maximum(h, 0.0)
    y = jnp.dot(h.astype(jnp.bfloat16), w2_ref[...],
                preferred_element_type=jnp.float32) + b2_ref[...]
    z = x + y
    mu = jnp.mean(z, axis=-1, keepdims=True)
    var = jnp.mean(jnp.square(z - mu), axis=-1, keepdims=True)
    o_ref[...] = ((z - mu) * lax.rsqrt(var + eps) * g_ref[...]
                  + b_ref[...]).astype(o_ref.dtype)


def pallas_ffn_res_ln(x, w1, b1, w2, b2, g, b, eps=1e-5):
    """LayerNorm(x + W2 relu(W1 x + b1) + b2) fused, hidden kept in VMEM."""
    orig_shape = x.shape
    D = orig_shape[-1]
    F = w1.shape[1]
    x2 = x.reshape(-1, D)
    M = x2.shape[0]
    tm = _row_tile(M)
    out = pl.pallas_call(
        partial(_ffn_res_ln_kernel, eps=eps),
        out_shape=jax.ShapeDtypeStruct((M, D), jnp.float32),
        grid=(pl.cdiv(M, tm),),
        in_specs=[
            pl.BlockSpec((tm, D), lambda i: (i, 0)),
            pl.BlockSpec((D, F), lambda i: (0, 0)),
            pl.BlockSpec((1, F), lambda i: (0, 0)),
            pl.BlockSpec((F, D), lambda i: (0, 0)),
            pl.BlockSpec((1, D), lambda i: (0, 0)),
            pl.BlockSpec((1, D), lambda i: (0, 0)),
            pl.BlockSpec((1, D), lambda i: (0, 0)),
        ],
        out_specs=pl.BlockSpec((tm, D), lambda i: (i, 0)),
        compiler_params=_cparams("parallel"),
    )(x2, w1.astype(jnp.bfloat16), b1.reshape(1, F).astype(jnp.float32),
      w2.astype(jnp.bfloat16), b2.reshape(1, D).astype(jnp.float32),
      g.reshape(1, D).astype(jnp.float32), b.reshape(1, D).astype(jnp.float32))
    return out.reshape(orig_shape)


def _convnext_mlp_kernel(inp_ref, dw_ref, g_ref, bln_ref, w1_ref, b1_ref,
                         w2_ref, b2_ref, gm_ref, o_ref, *, eps):
    xdw = dw_ref[...].astype(jnp.float32)
    mu = jnp.mean(xdw, axis=-1, keepdims=True)
    var = jnp.mean(jnp.square(xdw - mu), axis=-1, keepdims=True)
    y = (xdw - mu) * lax.rsqrt(var + eps) * g_ref[...] + bln_ref[...]
    h = jnp.dot(y.astype(jnp.bfloat16), w1_ref[...],
                preferred_element_type=jnp.float32) + b1_ref[...]
    # TODO(synk): exact erf GELU replaced by tanh approximation in-kernel.
    h = jax.nn.gelu(h, approximate=True)
    z = jnp.dot(h.astype(jnp.bfloat16), w2_ref[...],
                preferred_element_type=jnp.float32) + b2_ref[...]
    o_ref[...] = (inp_ref[...].astype(jnp.float32) + z * gm_ref[...]).astype(o_ref.dtype)


def pallas_convnext_mlp(inp, dw, g, bln, w1, b1, w2, b2, gamma, eps=1e-6):
    """Fused ConvNeXt block tail: LN(dw) -> pw1 -> GELU -> pw2 -> *gamma + inp."""
    N, H, W, C = inp.shape
    F = w1.shape[1]
    M = N * H * W
    x2 = inp.reshape(M, C)
    d2 = dw.reshape(M, C)
    tm = _row_tile(M, TILE_HEAVY)
    out = pl.pallas_call(
        partial(_convnext_mlp_kernel, eps=eps),
        out_shape=jax.ShapeDtypeStruct((M, C), jnp.float32),
        grid=(pl.cdiv(M, tm),),
        in_specs=[
            pl.BlockSpec((tm, C), lambda i: (i, 0)),
            pl.BlockSpec((tm, C), lambda i: (i, 0)),
            pl.BlockSpec((1, C), lambda i: (0, 0)),
            pl.BlockSpec((1, C), lambda i: (0, 0)),
            pl.BlockSpec((C, F), lambda i: (0, 0)),
            pl.BlockSpec((1, F), lambda i: (0, 0)),
            pl.BlockSpec((F, C), lambda i: (0, 0)),
            pl.BlockSpec((1, C), lambda i: (0, 0)),
            pl.BlockSpec((1, C), lambda i: (0, 0)),
        ],
        out_specs=pl.BlockSpec((tm, C), lambda i: (i, 0)),
        compiler_params=_cparams("parallel"),
    )(x2, d2, g.reshape(1, C).astype(jnp.float32), bln.reshape(1, C).astype(jnp.float32),
      w1.astype(jnp.bfloat16), b1.reshape(1, F).astype(jnp.float32),
      w2.astype(jnp.bfloat16), b2.reshape(1, C).astype(jnp.float32),
      gamma.reshape(1, C).astype(jnp.float32))
    return out.reshape(N, H, W, C)


def _conv3x3_kernel(x_ref, w_ref, b_ref, o_ref, acc_ref, *, relu):
    t = pl.program_id(1)

    @pl.when(t == 0)
    def _():
        acc_ref[...] = jnp.zeros_like(acc_ref)

    acc_ref[...] += jnp.dot(x_ref[...], w_ref[...],
                            preferred_element_type=jnp.float32)

    @pl.when(t == pl.num_programs(1) - 1)
    def _():
        y = acc_ref[...] + b_ref[...]
        if relu:
            y = jnp.maximum(y, 0.0)
        o_ref[...] = y.astype(o_ref.dtype)


def pallas_conv3x3(x, p, relu=False):
    """3x3 SAME conv (zero pad) as one fused pallas_call over 9 taps."""
    N, H, W, Cin = x.shape
    Cout = p['b'].shape[0]
    M = N * H * W
    xpb = jnp.pad(x, ((0, 0), (1, 1), (1, 1), (0, 0))).astype(jnp.bfloat16)
    taps = jnp.stack(
        [xpb[:, di:di + H, dj:dj + W, :].reshape(M, Cin)
         for di in range(3) for dj in range(3)], axis=0)          # [9, M, Cin]
    w9 = p['w'].reshape(9, Cin, Cout).astype(jnp.bfloat16)
    tm = _row_tile(M)
    out = pl.pallas_call(
        partial(_conv3x3_kernel, relu=relu),
        out_shape=jax.ShapeDtypeStruct((M, Cout), jnp.float32),
        grid=(pl.cdiv(M, tm), 9),
        in_specs=[
            pl.BlockSpec((None, tm, Cin), lambda i, t: (t, i, 0)),
            pl.BlockSpec((None, Cin, Cout), lambda i, t: (t, 0, 0)),
            pl.BlockSpec((1, Cout), lambda i, t: (0, 0)),
        ],
        out_specs=pl.BlockSpec((tm, Cout), lambda i, t: (i, 0)),
        scratch_shapes=[pltpu.VMEM((tm, Cout), jnp.float32)],
        compiler_params=_cparams("parallel", "arbitrary"),
    )(taps, w9, p['b'].reshape(1, Cout).astype(jnp.float32))
    return out.reshape(N, H, W, Cout)


def _mha_kernel(q_ref, k_ref, v_ref, o_ref, *, scale):
    q = q_ref[...].astype(jnp.bfloat16)
    k = k_ref[...].astype(jnp.bfloat16)
    s = jnp.einsum('bqd,bkd->bqk', q, k,
                   preferred_element_type=jnp.float32) * scale
    s = s - jnp.max(s, axis=-1, keepdims=True)
    p = jnp.exp(s)
    p = p * pl.reciprocal(jnp.sum(p, axis=-1, keepdims=True), approx=True)
    o = jnp.einsum('bqk,bkd->bqd', p.astype(jnp.bfloat16),
                   v_ref[...].astype(jnp.bfloat16),
                   preferred_element_type=jnp.float32)
    o_ref[...] = o.astype(o_ref.dtype)


def pallas_mha(q, k, v, num_heads=NUM_HEADS):
    """Multi-head softmax attention; heads folded into batch outside kernel."""
    B, Lq, D = q.shape
    Lk = k.shape[1]
    dh = D // num_heads

    def fold(a, L):
        return jnp.transpose(a.reshape(B, L, num_heads, dh),
                             (0, 2, 1, 3)).reshape(B * num_heads, L, dh)

    qf, kf, vf = fold(q, Lq), fold(k, Lk), fold(v, Lk)
    BH = B * num_heads
    # TODO(synk): very large Lq*Lk (pixel_samples >> 1k) would want a flash-style
    # chunked softmax; here the score block is kept under a fixed VMEM budget.
    budget = 4 * 1024 * 1024
    bt = max(1, min(128, budget // max(1, Lq * Lk * 4)))
    bt = min(bt, BH)
    out = pl.pallas_call(
        partial(_mha_kernel, scale=1.0 / math.sqrt(dh)),
        out_shape=jax.ShapeDtypeStruct((BH, Lq, dh), jnp.float32),
        grid=(pl.cdiv(BH, bt),),
        in_specs=[
            pl.BlockSpec((bt, Lq, dh), lambda i: (i, 0, 0)),
            pl.BlockSpec((bt, Lk, dh), lambda i: (i, 0, 0)),
            pl.BlockSpec((bt, Lk, dh), lambda i: (i, 0, 0)),
        ],
        out_specs=pl.BlockSpec((bt, Lq, dh), lambda i: (i, 0, 0)),
        compiler_params=_cparams("parallel"),
    )(qf, kf, vf)
    out = jnp.transpose(out.reshape(B, num_heads, Lq, dh), (0, 2, 1, 3))
    return out.reshape(B, Lq, D)


# ---------------------------------------------------------------------------
# Parameter init helpers (deterministic, synthetic weights)
# ---------------------------------------------------------------------------
class KeyGen:
    def __init__(self, seed=0):
        self.key = jax.random.PRNGKey(seed)

    def __call__(self):
        self.key, sub = jax.random.split(self.key)
        return sub


def init_linear(kg, din, dout, std=0.02):
    w = (std * jax.random.normal(kg(), (din, dout), jnp.float32)).astype(jnp.bfloat16)
    return {'w': w, 'b': jnp.zeros((dout,), jnp.float32)}


def init_ln(d):
    return {'g': jnp.ones((d,), jnp.float32), 'b': jnp.zeros((d,), jnp.float32)}


def linear(p, x, relu=False):
    return pallas_linear(x, p['w'], p['b'], relu=relu)


def layer_norm(p, x, eps=1e-5):
    return pallas_layernorm(x, p['g'], p['b'], eps=eps)


# ---------------------------------------------------------------------------
# Transformer (Set-Transformer style blocks used by SDM-UniPS)
# ---------------------------------------------------------------------------
def init_mab(kg, dim_Q, dim_K, dim_V, dim_ff):
    fc_q = init_linear(kg, dim_Q, dim_V)
    fc_k = init_linear(kg, dim_K, dim_V)
    fc_v = init_linear(kg, dim_K, dim_V)
    p = {'fc_q': fc_q, 'fc_k': fc_k, 'fc_v': fc_v,
         'ln0': init_ln(dim_V),
         'ff1': init_linear(kg, dim_V, dim_ff),
         'ff2': init_linear(kg, dim_ff, dim_V),
         'ln1': init_ln(dim_V)}
    # Pre-fused projection weights (avoids per-forward concatenation ops).
    p['wkv'] = jnp.concatenate([fc_k['w'], fc_v['w']], axis=1)
    p['bkv'] = jnp.concatenate([fc_k['b'], fc_v['b']], axis=0)
    if dim_Q == dim_K:
        p['wqkv'] = jnp.concatenate([fc_q['w'], fc_k['w'], fc_v['w']], axis=1)
        p['bqkv'] = jnp.concatenate([fc_q['b'], fc_k['b'], fc_v['b']], axis=0)
    return p


def mab(p, Q, K, num_heads=NUM_HEADS):
    # TODO(synk): sdm_unips transformer.py source is not provided; this is a
    # standard Set-Transformer MAB (projected-Q residual, post-LN, 2-layer FFN).
    Dv = p['fc_q']['w'].shape[1]
    if Q is K and 'wqkv' in p:  # SAB: single fused QKV projection
        qkv = pallas_linear(Q, p['wqkv'], p['bqkv'])
        q, k, v = qkv[..., :Dv], qkv[..., Dv:2 * Dv], qkv[..., 2 * Dv:]
    else:
        q = linear(p['fc_q'], Q)
        kv = pallas_linear(K, p['wkv'], p['bkv'])
        k, v = kv[..., :Dv], kv[..., Dv:]
    a = pallas_mha(q, k, v, num_heads)
    o = pallas_add_ln(q, a, p['ln0']['g'], p['ln0']['b'])
    return pallas_ffn_res_ln(o, p['ff1']['w'], p['ff1']['b'],
                             p['ff2']['w'], p['ff2']['b'],
                             p['ln1']['g'], p['ln1']['b'])


def sab(p, X):
    return mab(p, X, X)


def init_comm_block(kg, dim_input, num_enc_sab, dim_hidden, dim_ff):
    layers = []
    d = dim_input
    for _ in range(num_enc_sab):
        layers.append(init_mab(kg, d, d, dim_hidden, dim_ff))
        d = dim_hidden
    return layers


def comm_block(layers, X):
    for p in layers:
        X = sab(p, X)
    return X


def init_pma(kg, dim, num_seeds, dim_ff):
    return {'S': 0.02 * jax.random.normal(kg(), (num_seeds, dim), jnp.float32),
            'mab': init_mab(kg, dim, dim, dim, dim_ff)}


def pma(p, X):
    B = X.shape[0]
    S = jnp.broadcast_to(p['S'][None], (B,) + p['S'].shape)
    return mab(p['mab'], S, X)


def init_agg_block(kg, dim_input, num_enc_sab, num_outputs, dim_hidden, dim_ff):
    sabs = []
    d = dim_input
    for _ in range(num_enc_sab):
        sabs.append(init_mab(kg, d, d, dim_hidden, dim_ff))
        d = dim_hidden
    return {'sabs': sabs, 'pma': init_pma(kg, dim_hidden, num_outputs, dim_ff)}


def agg_block(p, X):
    for s in p['sabs']:
        X = sab(s, X)
    return pma(p['pma'], X)  # [B, num_outputs, dim_hidden]


# ---------------------------------------------------------------------------
# ConvNeXt backbone (NHWC internally)
# ---------------------------------------------------------------------------
def init_convnext(kg, in_chans=4, depths=CONVNEXT_DEPTHS, dims=CONVNEXT_DIMS):
    p = {'stem': {'conv': init_linear(kg, 4 * 4 * in_chans, dims[0]),
                  'norm': init_ln(dims[0])},
         'down': [], 'stages': [], 'out_norms': [init_ln(d) for d in dims]}
    for i in range(1, 4):
        p['down'].append({'norm': init_ln(dims[i - 1]),
                          'conv': init_linear(kg, 2 * 2 * dims[i - 1], dims[i])})
    for i in range(4):
        blocks = []
        d = dims[i]
        for _ in range(depths[i]):
            blocks.append({'dw_w': 0.02 * jax.random.normal(kg(), (7, 7, 1, d), jnp.float32),
                           'dw_b': jnp.zeros((d,), jnp.float32),
                           'norm': init_ln(d),
                           'pw1': init_linear(kg, d, 4 * d),
                           'pw2': init_linear(kg, 4 * d, d),
                           'gamma': 1e-6 * jnp.ones((d,), jnp.float32)})
        p['stages'].append(blocks)
    return p


def _patchify(x, s):
    N, H, W, C = x.shape
    x = x.reshape(N, H // s, s, W // s, s, C)
    x = jnp.transpose(x, (0, 1, 3, 2, 4, 5))
    return x.reshape(N, H // s, W // s, s * s * C)


def _depthwise7x7(x, w, b):
    # TODO(synk): depthwise 7x7 conv kept in plain JAX (lax.conv); grouped
    # spatial conv at these tiny spatial sizes has no clean Pallas mapping.
    C = x.shape[-1]
    y = lax.conv_general_dilated(
        x, w, window_strides=(1, 1), padding='SAME',
        dimension_numbers=('NHWC', 'HWIO', 'NHWC'), feature_group_count=C)
    return y + b


def convnext_block(p, x):
    dw = _depthwise7x7(x, p['dw_w'], p['dw_b'])
    return pallas_convnext_mlp(x, dw, p['norm']['g'], p['norm']['b'],
                               p['pw1']['w'], p['pw1']['b'],
                               p['pw2']['w'], p['pw2']['b'], p['gamma'])


def convnext_backbone(p, x_nchw):
    x = jnp.transpose(x_nchw, (0, 2, 3, 1))  # NCHW -> NHWC
    outs = []
    for i in range(4):
        if i == 0:
            x = _patchify(x, 4)
            x = linear(p['stem']['conv'], x)
            x = layer_norm(p['stem']['norm'], x, eps=1e-6)
        else:
            x = layer_norm(p['down'][i - 1]['norm'], x, eps=1e-6)
            x = _patchify(x, 2)
            x = linear(p['down'][i - 1]['conv'], x)
        for bp in p['stages'][i]:
            x = convnext_block(bp, x)
        xo = layer_norm(p['out_norms'][i], x, eps=1e-6)
        outs.append(jnp.transpose(xo, (0, 3, 1, 2)))  # back to NCHW
    return outs


# ---------------------------------------------------------------------------
# Resizes / grid_sample / pooling glue (plain JAX)
# ---------------------------------------------------------------------------
def resize_bilinear_nhwc(x, oh, ow, align_corners):
    N, H, W, C = x.shape
    if (H, W) == (oh, ow):
        return x

    def coords(o, i):
        if align_corners:
            if o == 1:
                return jnp.zeros((1,), jnp.float32)
            return jnp.linspace(0.0, i - 1.0, o)
        c = (jnp.arange(o, dtype=jnp.float32) + 0.5) * (i / o) - 0.5
        return jnp.clip(c, 0.0, i - 1.0)

    ys = coords(oh, H)
    xs = coords(ow, W)
    y0 = jnp.floor(ys).astype(jnp.int32)
    y1 = jnp.minimum(y0 + 1, H - 1)
    x0 = jnp.floor(xs).astype(jnp.int32)
    x1 = jnp.minimum(x0 + 1, W - 1)
    wy = (ys - y0.astype(jnp.float32))[None, :, None, None]
    wx = (xs - x0.astype(jnp.float32))[None, None, :, None]
    a = x[:, y0][:, :, x0]
    b = x[:, y0][:, :, x1]
    c = x[:, y1][:, :, x0]
    d = x[:, y1][:, :, x1]
    return a * (1 - wy) * (1 - wx) + b * (1 - wy) * wx + c * wy * (1 - wx) + d * wy * wx


def resize_bilinear_nchw(x, oh, ow, align_corners):
    N, C, H, W = x.shape
    if (H, W) == (oh, ow):
        return x
    y = resize_bilinear_nhwc(jnp.transpose(x, (0, 2, 3, 1)), oh, ow, align_corners)
    return jnp.transpose(y, (0, 3, 1, 2))


def resize_nearest_nchw(x, oh, ow):
    N, C, H, W = x.shape
    if (H, W) == (oh, ow):
        return x
    ys = jnp.floor(jnp.arange(oh) * (H / oh)).astype(jnp.int32)
    xs = jnp.floor(jnp.arange(ow) * (W / ow)).astype(jnp.int32)
    return x[:, :, ys][:, :, :, xs]


def adaptive_avg_pool(x, oh, ow):
    N, H, W, C = x.shape
    rows = []
    for i in range(oh):
        h0 = (i * H) // oh
        h1 = max(h0 + 1, -(-((i + 1) * H) // oh))
        cols = []
        for j in range(ow):
            w0 = (j * W) // ow
            w1 = max(w0 + 1, -(-((j + 1) * W) // ow))
            cols.append(jnp.mean(x[:, h0:h1, w0:w1, :], axis=(1, 2)))
        rows.append(jnp.stack(cols, axis=1))
    return jnp.stack(rows, axis=1)


def grid_sample_bilinear(x, grid):
    """x: [N,C,H,W]; grid: [N,Hg,Wg,2] with (x,y) in [-1,1]; align_corners=False."""
    N, C, H, W = x.shape
    gx = grid[..., 0]
    gy = grid[..., 1]
    ix = ((gx + 1.0) * W - 1.0) / 2.0
    iy = ((gy + 1.0) * H - 1.0) / 2.0
    x0 = jnp.floor(ix).astype(jnp.int32)
    x1 = x0 + 1
    y0 = jnp.floor(iy).astype(jnp.int32)
    y1 = y0 + 1
    wx1 = ix - x0.astype(jnp.float32)
    wx0 = 1.0 - wx1
    wy1 = iy - y0.astype(jnp.float32)
    wy0 = 1.0 - wy1
    flat = x.reshape(N, C, H * W)

    def gather(yy, xx):
        valid = ((xx >= 0) & (xx < W) & (yy >= 0) & (yy < H)).astype(x.dtype)
        yyc = jnp.clip(yy, 0, H - 1)
        xxc = jnp.clip(xx, 0, W - 1)
        idx = (yyc * W + xxc).reshape(N, 1, -1)
        vals = jnp.take_along_axis(
            flat, jnp.broadcast_to(idx, (N, C, idx.shape[-1])), axis=2)
        return vals.reshape((N, C) + yy.shape[1:]) * valid[:, None]

    return (gather(y0, x0) * (wy0 * wx0)[:, None] + gather(y0, x1) * (wy0 * wx1)[:, None]
            + gather(y1, x0) * (wy1 * wx0)[:, None] + gather(y1, x1) * (wy1 * wx1)[:, None])


def gauss_smooth(glc, ksize, sigma=1.0):
    # TODO(synk): gauss_filter.gauss_filter internals unavailable; depthwise 2-D
    # Gaussian blur with SAME zero padding in plain JAX.
    ax = jnp.arange(ksize, dtype=jnp.float32) - (ksize - 1) / 2.0
    g1 = jnp.exp(-(ax ** 2) / (2.0 * sigma ** 2))
    g2 = jnp.outer(g1, g1)
    g2 = g2 / jnp.sum(g2)
    C = glc.shape[1]
    x = jnp.transpose(glc, (0, 2, 3, 1))
    w = jnp.tile(g2[:, :, None, None], (1, 1, 1, C))
    y = lax.conv_general_dilated(x, w, (1, 1), 'SAME',
                                 dimension_numbers=('NHWC', 'HWIO', 'NHWC'),
                                 feature_group_count=C)
    return jnp.transpose(y, (0, 3, 1, 2))


# ---------------------------------------------------------------------------
# UPerHead (convs as Pallas matmuls)
# ---------------------------------------------------------------------------
def init_conv3x3(kg, cin, cout, std=0.02):
    w = (std * jax.random.normal(kg(), (3, 3, cin, cout), jnp.float32)).astype(jnp.bfloat16)
    return {'w': w, 'b': jnp.zeros((cout,), jnp.float32)}


def init_uper(kg, in_channels=CONVNEXT_DIMS, channels=FEAT_DIM):
    return {'ppm': [init_linear(kg, in_channels[-1], channels) for _ in POOL_SCALES],
            'bottleneck': init_conv3x3(kg, in_channels[-1] + len(POOL_SCALES) * channels, channels),
            'laterals': [init_linear(kg, in_channels[i], channels) for i in range(3)],
            'fpn': [init_conv3x3(kg, channels, channels) for _ in range(3)],
            'fpn_bottleneck': init_conv3x3(kg, 4 * channels, channels)}


def uper_head(p, feats_nchw):
    # TODO(synk): uper.py source unavailable; standard mmseg UPerHead topology,
    # ConvModule BatchNorm omitted (conv + ReLU only), no cls_seg head.
    feats = [jnp.transpose(f, (0, 2, 3, 1)) for f in feats_nchw]  # NHWC
    x3 = feats[3]
    H3, W3 = x3.shape[1], x3.shape[2]
    psp = [x3]
    for scale, cp in zip(POOL_SCALES, p['ppm']):
        y = adaptive_avg_pool(x3, scale, scale)
        y = pallas_linear(y, cp['w'], cp['b'], relu=True)
        psp.append(resize_bilinear_nhwc(y, H3, W3, align_corners=False))
    lat3 = pallas_conv3x3(jnp.concatenate(psp, axis=-1), p['bottleneck'], relu=True)
    laterals = [pallas_linear(feats[i], p['laterals'][i]['w'],
                              p['laterals'][i]['b'], relu=True)
                for i in range(3)] + [lat3]
    for i in range(3, 0, -1):
        h, w = laterals[i - 1].shape[1], laterals[i - 1].shape[2]
        laterals[i - 1] = laterals[i - 1] + resize_bilinear_nhwc(
            laterals[i], h, w, align_corners=False)
    outs = [pallas_conv3x3(laterals[i], p['fpn'][i], relu=True)
            for i in range(3)] + [laterals[3]]
    h0, w0 = outs[0].shape[1], outs[0].shape[2]
    outs = [resize_bilinear_nhwc(o, h0, w0, align_corners=False) for o in outs]
    out = pallas_conv3x3(jnp.concatenate(outs, axis=-1), p['fpn_bottleneck'], relu=True)
    return jnp.transpose(out, (0, 3, 1, 2))  # NCHW


# ---------------------------------------------------------------------------
# ImageFeatureFusion + ScaleInvariantSpatialLightImageEncoder
# ---------------------------------------------------------------------------
def init_fusion(kg, in_channels=CONVNEXT_DIMS):
    comm = []
    for i, c in enumerate(in_channels):
        if NUM_COMM_ENC[i] > 0:
            comm.append(init_comm_block(kg, c, NUM_COMM_ENC[i], c, c))
    return {'comm': comm, 'uper': init_uper(kg, in_channels)}


def image_feature_fusion(p, glc_list, nImgArray):
    batch_size = len(nImgArray)
    sum_nimg = int(np.sum(nImgArray))
    out_fuse = []
    attn_cnt = 0
    for k in range(len(glc_list)):
        if NUM_COMM_ENC[k] > 0:
            in_fuse = glc_list[k]
            _, C, H, W = in_fuse.shape
            in_fuse = in_fuse.reshape(-1, sum_nimg, C, H, W)
            in_fuse = jnp.transpose(in_fuse, (0, 3, 4, 1, 2))
            Kp1 = in_fuse.shape[0]
            in_fuse = in_fuse.reshape(-1, sum_nimg, C)
            feats = []
            ids = 0
            for b in range(batch_size):
                nb = int(nImgArray[b])
                feat = in_fuse[:, ids:ids + nb, :]
                feat = comm_block(p['comm'][attn_cnt], feat)
                feats.append(feat)
                ids += nb
            feats = jnp.concatenate(feats, axis=1)
            feats = feats.reshape(Kp1, H * W, sum_nimg, C)
            feats = jnp.transpose(feats, (0, 2, 3, 1)).reshape(Kp1 * sum_nimg, C, H, W)
            out_fuse.append(feats)
            attn_cnt += 1
        else:
            out_fuse.append(glc_list[k])
    return uper_head(p['uper'], out_fuse)


def divide_tensor_spatial(x, block_size):
    # TODO(synk): original divide/merge utilities unavailable; 'tile_stride'
    # decomposition implemented consistently with merge_tensor_spatial below.
    N, C, H, W = x.shape
    s = H // block_size
    blocks = []
    for i in range(s):
        for j in range(s):
            blocks.append(x[:, :, i::s, j::s])
    return jnp.stack(blocks, axis=1)  # [N, K, C, hc, wc]


def merge_tensor_spatial(x):
    K, N, C, hc, wc = x.shape
    s = int(round(math.sqrt(K)))
    out = jnp.zeros((N, C, hc * s, wc * s), x.dtype)
    idx = 0
    for i in range(s):
        for j in range(s):
            out = out.at[:, :, i::s, j::s].set(x[idx])
            idx += 1
    return out


def init_image_encoder(kg):
    return {'backbone': init_convnext(kg), 'fusion': init_fusion(kg)}


def image_encoder(p, x, nImgArray, canonical_resolution):
    N, C, H, W = x.shape
    mosaic_scale = H // canonical_resolution
    K = mosaic_scale * mosaic_scale
    cr = canonical_resolution
    x_resized = resize_bilinear_nchw(x, cr, cr, align_corners=True)
    x_grid = divide_tensor_spatial(x, cr)
    x_grid = jnp.transpose(x_grid, (1, 0, 2, 3, 4)).reshape(-1, C, cr, cr)
    f = image_feature_fusion(p['fusion'], convnext_backbone(p['backbone'], x_resized), nImgArray)
    f_resized = f.reshape(1, N, FEAT_DIM, (cr // 4) * (cr // 4))
    g = image_feature_fusion(p['fusion'], convnext_backbone(p['backbone'], x_grid), nImgArray)
    g = g.reshape(K, N, g.shape[1], cr // 4, cr // 4)
    glc_grid = merge_tensor_spatial(g)
    glc_resized = resize_bilinear_nchw(
        f_resized.reshape(N, FEAT_DIM, cr // 4, cr // 4), H // 4, W // 4, align_corners=True)
    return glc_resized + glc_grid


# ---------------------------------------------------------------------------
# GLC_Upsample / GLC_Aggregation / Regressor
# ---------------------------------------------------------------------------
def init_glc_upsample(kg):
    return init_comm_block(kg, 256 + 3, 1, 256, 1024)


def init_glc_aggregation(kg):
    return init_agg_block(kg, 256 + 3, 2, 1, 384, 1024)


def init_regressor(kg, target='normal'):
    p = {'comm': init_comm_block(kg, 384, 1, 384, 1024),
         'pred_normal': {'fc1': init_linear(kg, 384, 192), 'fc2': init_linear(kg, 192, 3)}}
    if target == 'brdf':
        p['pred_base'] = {'fc1': init_linear(kg, 384, 192), 'fc2': init_linear(kg, 192, 3)}
        p['pred_rough'] = {'fc1': init_linear(kg, 384, 192), 'fc2': init_linear(kg, 192, 1)}
        p['pred_metal'] = {'fc1': init_linear(kg, 384, 192), 'fc2': init_linear(kg, 192, 1)}
    return p


def prediction_head(p, x):
    # Fused Linear -> ReLU -> Linear (hidden kept in VMEM).
    return pallas_mlp_head(x, p['fc1']['w'], p['fc1']['b'],
                           p['fc2']['w'], p['fc2']['b'])


def regressor(p, x, num_sample_set, target='normal'):
    n, F = x.shape
    if n % num_sample_set == 0:
        x_ = x.reshape(-1, num_sample_set, F)
        x_ = comm_block(p['comm'], x_)
        x = x_.reshape(-1, F)
    else:
        num_split = n // num_sample_set
        parts = []
        if num_split > 0:  # guard empty split
            x1 = x[:num_split * num_sample_set].reshape(-1, num_sample_set, F)
            parts.append(comm_block(p['comm'], x1).reshape(-1, F))
        x2 = x[num_split * num_sample_set:].reshape(1, -1, F)
        parts.append(comm_block(p['comm'], x2).reshape(-1, F))
        x = jnp.concatenate(parts, axis=0)
    x_n = prediction_head(p['pred_normal'], x)
    if target == 'brdf':
        x_brdf = (prediction_head(p['pred_base'], x),
                  prediction_head(p['pred_rough'], x),
                  prediction_head(p['pred_metal'], x))
    else:
        x_brdf = []
    return x_n, x_brdf


# ---------------------------------------------------------------------------
# Net
# ---------------------------------------------------------------------------
def make_index_list(Nmax, nImgArray):
    idx = np.zeros((len(nImgArray), Nmax), np.int32)
    for b, n in enumerate(nImgArray):
        idx[b, :int(n)] = 1
    return idx.reshape(-1)


def ind2coords(size, ids):
    H, W = size
    y = (ids // W).astype(np.float32)
    x = (ids % W).astype(np.float32)
    gx = (2.0 * x + 1.0) / W - 1.0
    gy = (2.0 * y + 1.0) / H - 1.0
    return jnp.asarray(np.stack([gx, gy], axis=-1).reshape(1, len(ids), 1, 2), jnp.float32)


def init_net(kg, target='normal'):
    return {'image_encoder': init_image_encoder(kg),
            'glc_upsample': init_glc_upsample(kg),
            'glc_aggregation': init_glc_aggregation(kg),
            'regressor': init_regressor(kg, target)}


def net_forward(params, I, M, nImgArray, decoder_resolution, canonical_resolution,
                pixel_samples, target='normal', glc_smoothing=True):
    decoder_resolution = int(np.asarray(decoder_resolution)[0, 0])
    canonical_resolution = int(np.asarray(canonical_resolution)[0, 0])
    B, C, H, W, Nmax = I.shape

    # --- Image encoder at canonical resolution ---
    I_enc = jnp.transpose(I, (0, 4, 1, 2, 3)).reshape(-1, C, H, W)
    M_enc = jnp.broadcast_to(M[:, None], (B, Nmax, 1, H, W)).reshape(-1, 1, H, W)
    img_index = make_index_list(Nmax, nImgArray)
    keep = np.nonzero(img_index == 1)[0]
    data = jnp.concatenate([I_enc * M_enc, M_enc], axis=1)[keep]
    glc = image_encoder(params['image_encoder'], data, nImgArray, canonical_resolution)

    # --- Sample decoder at original resolution ---
    img = I_enc[keep]
    Hd = Wd = decoder_resolution
    I_dec = resize_bilinear_nchw(img, Hd, Wd, align_corners=False)
    M_dec = resize_nearest_nchw(M, Hd, Wd)
    Cc = img.shape[1]

    nout = jnp.zeros((B, Hd * Wd, 3), jnp.float32)
    bout = jnp.zeros((B, Hd * Wd, 3), jnp.float32)
    rout = jnp.zeros((B, Hd * Wd, 1), jnp.float32)
    mout = jnp.zeros((B, Hd * Wd, 1), jnp.float32)

    if glc_smoothing:
        f_scale = decoder_resolution // canonical_resolution
        glc = gauss_smooth(glc, 10 * f_scale + 1, 1.0)

    # TODO(synk): chunks are not padded to a fixed pixel_samples size, so each
    # distinct (len(ids), nb) shape still triggers its own trace/compile.
    p = 0
    for b in range(B):
        nb = int(nImgArray[b])
        tgt = np.arange(p, p + nb)
        p += nb
        m_ = np.asarray(M_dec[b].reshape(-1, Hd * Wd).T)  # [H*W, 1]
        ids_all = np.nonzero(m_ > 0)[0]
        ids_all = ids_all[np.random.permutation(len(ids_all))]
        if len(ids_all) > pixel_samples:
            num_split = len(ids_all) // pixel_samples + 1
            idset = np.array_split(ids_all, num_split)
        else:
            idset = [ids_all]
        o_ = jnp.transpose(I_dec[tgt].reshape(nb, Cc, Hd * Wd), (2, 0, 1))
        glc_b = glc[tgt]
        for ids in idset:
            if len(ids) == 0:
                continue
            ids = np.asarray(ids)
            o_ids = o_[ids]
            coords = jnp.broadcast_to(ind2coords((Hd, Wd), ids), (nb, len(ids), 1, 2))
            glc_ids = grid_sample_bilinear(glc_b, coords)
            glc_ids = jnp.transpose(glc_ids.reshape(nb, -1, len(ids)), (2, 0, 1))
            x = jnp.concatenate([o_ids, glc_ids], axis=2)
            glc_ids = comm_block(params['glc_upsample'], x)
            x = jnp.concatenate([o_ids, glc_ids], axis=2)
            x = agg_block(params['glc_aggregation'], x)[:, 0, :]
            x_n, x_brdf = regressor(params['regressor'], x, len(ids), target)
            X_n = x_n / jnp.maximum(jnp.linalg.norm(x_n, axis=1, keepdims=True), 1e-12)
            ids_j = jnp.asarray(ids)
            if target == 'normal':
                nout = nout.at[b, ids_j, :].set(X_n)
            if target == 'brdf':
                bout = bout.at[b, ids_j, :].set(jnp.maximum(x_brdf[0], 0.0))
                rout = rout.at[b, ids_j, :].set(jnp.maximum(x_brdf[1], 0.0))
                mout = mout.at[b, ids_j, :].set(jnp.maximum(x_brdf[2], 0.0))

    nout = jnp.transpose(nout, (0, 2, 1)).reshape(B, 3, Hd, Wd)
    bout = jnp.transpose(bout, (0, 2, 1)).reshape(B, 3, Hd, Wd)
    rout = jnp.transpose(rout, (0, 2, 1)).reshape(B, 1, Hd, Wd)
    mout = jnp.transpose(mout, (0, 2, 1)).reshape(B, 1, Hd, Wd)
    return nout, bout, rout, mout


# ---------------------------------------------------------------------------
if __name__ == "__main__":
    np.random.seed(0)
    kg = KeyGen(0)
    params = init_net(kg, target='normal')

    key = jax.random.PRNGKey(0)
    B, C, H, W, Nmax = 1, 3, 32, 32, 3
    nImgArray = np.array([2], dtype=np.int32)
    canonical_resolution = jnp.array([[32]], dtype=jnp.int32)
    decoder_resolution = jnp.array([[32]], dtype=jnp.int32)
    pixel_samples = 1000

    kI, _ = jax.random.split(key)
    I = jax.random.uniform(kI, (B, C, H, W, Nmax), jnp.float32)
    M = jnp.zeros((B, 1, H, W), jnp.float32).at[:, :, 8:24, 8:24].set(1.0)

    nout, bout, rout, mout = net_forward(
        params, I, M, nImgArray, decoder_resolution, canonical_resolution,
        pixel_samples, target='normal')
    jax.block_until_ready((nout, bout, rout, mout))

    assert nout.shape == (B, 3, 32, 32) and bout.shape == (B, 3, 32, 32)
    assert rout.shape == (B, 1, 32, 32) and mout.shape == (B, 1, 32, 32)
    assert bool(jnp.all(jnp.isfinite(nout)))
    print("KERNEL_OK")
</pallas_src>

<mosaic_0001>
module attributes {stable_mosaic.version = 11 : i64} {
  func.func @_linear_kernel(%arg0: i32, %arg1: memref<128x64xf32, #tpu.memory_space<vmem>>, %arg2: memref<64x96xbf16, #tpu.memory_space<vmem>>, %arg3: memref<1x96xf32, #tpu.memory_space<vmem>>, %arg4: memref<128x96xf32, #tpu.memory_space<vmem>>) attributes {dimension_semantics = [#tpu.dimension_semantics<parallel>], iteration_bounds = array<i64: 1>, scalar_prefetch = 0 : i64, scratch_operands = 0 : i64, tpu.core_type = #tpu.core_type<tc>, window_params = [{transform_indices = @transform_0, window_bounds = array<i64: 128, 64>}, {pipeline_mode = #tpu.pipeline_mode<synchronous>, transform_indices = @transform_1, window_bounds = array<i64: 64, 96>}, {pipeline_mode = #tpu.pipeline_mode<synchronous>, transform_indices = @transform_2, window_bounds = array<i64: 1, 96>}, {transform_indices = @transform_3, window_bounds = array<i64: 128, 96>}]} {
    %c0 = arith.constant 0 : index
    %c0_0 = arith.constant 0 : index
    %0 = vector.load %arg1[%c0, %c0_0] : memref<128x64xf32, #tpu.memory_space<vmem>>, vector<128x64xf32>
    %1 = arith.truncf %0 : vector<128x64xf32> to vector<128x64xbf16>
    %c0_1 = arith.constant 0 : index
    %c0_2 = arith.constant 0 : index
    %2 = vector.load %arg2[%c0_1, %c0_2] : memref<64x96xbf16, #tpu.memory_space<vmem>>, vector<64x96xbf16>
    %cst = arith.constant dense<0.000000e+00> : vector<128x96xf32>
    %3 = tpu.matmul %1, %2, %cst {dimension_numbers = #tpu.dot_dimension_numbers<[1], [0], [0], [1], [0, 0, 1, 1], [], []>} : vector<128x64xbf16>, vector<64x96xbf16>, vector<128x96xf32> -> vector<128x96xf32>
    %c0_3 = arith.constant 0 : index
    %c0_4 = arith.constant 0 : index
    %4 = vector.load %arg3[%c0_3, %c0_4] : memref<1x96xf32, #tpu.memory_space<vmem>>, vector<1x96xf32>
    %5 = vector.broadcast %4 : vector<1x96xf32> to vector<128x96xf32>
    %6 = arith.addf %3, %5 : vector<128x96xf32>
    %c0_5 = arith.constant 0 : index
    %c0_6 = arith.constant 0 : index
    %7 = vector.load %arg4[%c0_5, %c0_6] : memref<128x96xf32, #tpu.memory_space<vmem>>, vector<128x96xf32>
    tpu.vector_store %arg4[%c0_5, %c0_6], %6 {strides = array<i32>} : memref<128x96xf32, #tpu.memory_space<vmem>>, vector<128x96xf32>,
    return
  }
  func.func @transform_0(%arg0: i32) -> (i32, i32) {
    %c0_i32 = arith.constant 0 : i32
    %c0_i32_0 = arith.constant 0 : i32
    return %arg0, %c0_i32 : i32, i32
  }
  func.func @transform_1(%arg0: i32) -> (i32, i32) {
    %c0_i32 = arith.constant 0 : i32
    %c0_i32_0 = arith.constant 0 : i32
    %c0_i32_1 = arith.constant 0 : i32
    return %c0_i32, %c0_i32_0 : i32, i32
  }
  func.func @transform_2(%arg0: i32) -> (i32, i32) {
    %c0_i32 = arith.constant 0 : i32
    %c0_i32_0 = arith.constant 0 : i32
    %c0_i32_1 = arith.constant 0 : i32
    return %c0_i32, %c0_i32_0 : i32, i32
  }
  func.func @transform_3(%arg0: i32) -> (i32, i32) {
    %c0_i32 = arith.constant 0 : i32
    %c0_i32_0 = arith.constant 0 : i32
    return %arg0, %c0_i32 : i32, i32
  }
}

</mosaic_0001>

<llo_original>
// kernel: tpu_custom_call.1
$region0: #{tpu_custom_call.1}
  #allocation0 [shape = 'u32[]', space=smem, size = 0x4, offset = 0x4, fixed_abs, tag = 'smem constant byte address 0x4 - core index']
  #allocation1 [shape = 'u32[144,128]{1,0:T(1,128)}', space=vmem, size = 0x12000, scoped, tag = 'internal scratch']
  %s0 = inlined_call_operand.vmem [shape: f32[128,64], index: 0, kind: input, shape index: {}]
  %s1 = inlined_call_operand.vmem [shape: bf16[64,96], index: 1, kind: input, shape index: {}]
  %s2 = inlined_call_operand.vmem [shape: f32[1,96], index: 2, kind: input, shape index: {}]
  %s3 = inlined_call_operand.vmem [shape: f32[128,96], index: 3, kind: output, shape index: {}]
  %s4 = sld [smem:[#allocation0]]
  $region22: #{tpu_custom_call.1} parent=0
    _
  %s6 = ssub.s32 1, %s4
  %s7 = scalar_select 0, %s6, %s4
  // Predicated region
  $region2: #{tpu_custom_call.1} parent=0 // pred_check
    _
  $region3: #{tpu_custom_call.1} parent=0 // pred_check_branch
    %9 = sbr.rel (0) target = $region5
  $region4: #{tpu_custom_call.1} parent=0 // pred_region
    _
  $region5: #{tpu_custom_call.1} parent=0 // pred_fallthru
    _
  // Predicated region
  $region6: #{tpu_custom_call.1} parent=0 // pred_check
    _
  $region7: #{tpu_custom_call.1} parent=0 // pred_check_branch
    %11 = sbr.rel (0) target = $region9
  $region8: #{tpu_custom_call.1} parent=0 // pred_region
    _
  $region9: #{tpu_custom_call.1} parent=0 // pred_fallthru
    _
  // Predicated region
  $region10: #{tpu_custom_call.1} parent=0 // pred_check
    _
  $region11: #{tpu_custom_call.1} parent=0 // pred_check_branch
    %13 = sbr.rel (0) target = $region13
  $region12: #{tpu_custom_call.1} parent=0 // pred_region
    _
  $region13: #{tpu_custom_call.1} parent=0 // pred_fallthru
    _
  %v15 = vld [vmem:[%s0] sm:$0xff]
  %v16 = vld [vmem:[%s0 + $0x8] sm:$0xff]
  %v17 = vld [vmem:[%s0 + $0x10] sm:$0xff]
  %v18 = vld [vmem:[%s0 + $0x18] sm:$0xff]
  %v19 = vld [vmem:[%s0 + $0x20] sm:$0xff]
  %v20 = vld [vmem:[%s0 + $0x28] sm:$0xff]
  %v21 = vld [vmem:[%s0 + $0x30] sm:$0xff]
  %v22 = vld [vmem:[%s0 + $0x38] sm:$0xff]
  %v23 = vld [vmem:[%s0 + $0x40] sm:$0xff]
  %v24 = vld [vmem:[%s0 + $0x48] sm:$0xff]
  %v25 = vld [vmem:[%s0 + $0x50] sm:$0xff]
  %v26 = vld [vmem:[%s0 + $0x58] sm:$0xff]
  %v27 = vld [vmem:[%s0 + $0x60] sm:$0xff]
  %v28 = vld [vmem:[%s0 + $0x68] sm:$0xff]
  %v29 = vld [vmem:[%s0 + $0x70] sm:$0xff]
  %v30 = vld [vmem:[%s0 + $0x78] sm:$0xff]
  %v31 = vpack.c.bf16 %v16, %v15
  %v32 = vpack.c.bf16 %v18, %v17
  %v33 = vpack.c.bf16 %v20, %v19
  %v34 = vpack.c.bf16 %v22, %v21
  %v35 = vpack.c.bf16 %v24, %v23
  %v36 = vpack.c.bf16 %v26, %v25
  %v37 = vpack.c.bf16 %v28, %v27
  %v38 = vpack.c.bf16 %v30, %v29
  %v39 = vld [vmem:[%s1] sm:$0xf]
  %v40 = vld [vmem:[%s1 + $0x4] sm:$0xf]
  %v41 = vld [vmem:[%s1 + $0x8] sm:$0xf]
  %v42 = vld [vmem:[%s1 + $0xc] sm:$0xf]
  %v43 = vld [vmem:[%s1 + $0x10] sm:$0xf]
  %v44 = vld [vmem:[%s1 + $0x14] sm:$0xf]
  %v45 = vld [vmem:[%s1 + $0x18] sm:$0xf]
  %v46 = vld [vmem:[%s1 + $0x1c] sm:$0xf]
  %v47 = vld [vmem:[%s2] sm:$0x1]
  %v49 = vlaneseq
  %v50 = vshrl.u32 %v49, 7
  %v51 = vsub.s32 0, %v50
  %v52 = vrot.slane %v47, %v51
  %v62 = vunpack.c.l.b16 %v39
  %v63 = vunpack.c.l.b16 %v40
  %v64 = vunpack.c.l.b16 %v41
  %v65 = vunpack.c.l.b16 %v42
  %v66 = vunpack.c.l.b16 %v43
  %v67 = vunpack.c.l.b16 %v44
  %v68 = vunpack.c.l.b16 %v45
  %v69 = vunpack.c.l.b16 %v46
  %v70 = vpack.c.b16 %v63, %v62
  %v71 = vpack.c.b16 %v65, %v64
  %v72 = vpack.c.b16 %v67, %v66
  %v73 = vpack.c.b16 %v69, %v68
  %vm78 = vcmask 523264
  %v80 = vsel %vm78, %v31, 0
  %v83 = vsel %vm78, %v32, 0
  %v86 = vsel %vm78, %v33, 0
  %v89 = vsel %vm78, %v34, 0
  %v92 = vsel %vm78, %v35, 0
  %v95 = vsel %vm78, %v36, 0
  %v98 = vsel %vm78, %v37, 0
  %v101 = vsel %vm78, %v38, 0
  %103 = vmatprep.subr.bf16.mxu0 0
  %104 = vmatpush1.bf16.msra.mxu0 0
  %105 = vmatprep.subr.bf16.mxu0 0
  %106 = vmatpush1.bf16.msra.mxu0 0
  %107 = vmatprep.subr.bf16.mxu0 0
  %108 = vmatpush1.bf16.msra.mxu0 0
  %109 = vmatprep.subr.bf16.mxu0 0
  %110 = vmatpush1.bf16.msra.mxu0 0
  %111 = vmatprep.subr.bf16.mxu0 0
  %112 = vmatpush1.bf16.msra.mxu0 %v73
  %113 = vmatprep.subr.bf16.mxu0 0
  %114 = vmatpush1.bf16.msra.mxu0 %v72
  %115 = vmatprep.subr.bf16.mxu0 0
  %116 = vmatpush1.bf16.msra.mxu0 %v71
  %117 = vmatprep.subr.bf16.mxu0 0
  %118 = vmatpush1.bf16.msra.mxu0 %v70
  %119 = vmatprep.subr.bf16.mxu0 0
  %120 = vmatpush2.bf16.msra.mxu0 0
  %121 = vmatprep.subr.bf16.mxu0 0
  %122 = vmatpush2.bf16.msra.mxu0 0
  %123 = vmatprep.subr.bf16.mxu0 0
  %124 = vmatpush2.bf16.msra.mxu0 0
  %125 = vmatprep.subr.bf16.mxu0 0
  %126 = vmatpush2.bf16.msra.mxu0 0
  %127 = vmatprep.subr.bf16.mxu0 0
  %128 = vmatpush2.bf16.msra.mxu0 0
  %129 = vmatprep.subr.bf16.mxu0 0
  %130 = vmatpush2.bf16.msra.mxu0 0
  %131 = vmatprep.subr.bf16.mxu0 0
  %132 = vmatpush2.bf16.msra.mxu0 0
  %133 = vmatprep.subr.bf16.mxu0 0
  %134 = vmatpush2.bf16.msra.mxu0 0
  %135 = vmatprep.mubr.bf16.mxu0 0
  %136 = vmatmul.mubr.bf16.gmra.mxu0 %v80
  %v137 = vpop.f32.mrf.mxu0
  %v138 = vadd.f32 %v52, %v137
  %v139 = vpop.f32.mrf.mxu0
  %v140 = vpop.f32.mrf.mxu0
  %v141 = vadd.f32 %v52, %v140
  %v142 = vpop.f32.mrf.mxu0
  %143 = vmatprep.mubr.bf16.mxu0 0
  %144 = vmatmul.mubr.bf16.gmra.mxu0 %v83
  %v145 = vpop.f32.mrf.mxu0
  %v146 = vadd.f32 %v52, %v145
  %v147 = vpop.f32.mrf.mxu0
  %v148 = vpop.f32.mrf.mxu0
  %v149 = vadd.f32 %v52, %v148
  %v150 = vpop.f32.mrf.mxu0
  %151 = vmatprep.mubr.bf16.mxu0 0
  %152 = vmatmul.mubr.bf16.gmra.mxu0 %v86
  %v153 = vpop.f32.mrf.mxu0
  %v154 = vadd.f32 %v52, %v153
  %v155 = vpop.f32.mrf.mxu0
  %v156 = vpop.f32.mrf.mxu0
  %v157 = vadd.f32 %v52, %v156
  %v158 = vpop.f32.mrf.mxu0
  %159 = vmatprep.mubr.bf16.mxu0 0
  %160 = vmatmul.mubr.bf16.gmra.mxu0 %v89
  %v161 = vpop.f32.mrf.mxu0
  %v162 = vadd.f32 %v52, %v161
  %v163 = vpop.f32.mrf.mxu0
  %v164 = vpop.f32.mrf.mxu0
  %v165 = vadd.f32 %v52, %v164
  %v166 = vpop.f32.mrf.mxu0
  %167 = vmatprep.mubr.bf16.mxu0 0
  %168 = vmatmul.mubr.bf16.gmra.mxu0 %v92
  %v169 = vpop.f32.mrf.mxu0
  %v170 = vadd.f32 %v52, %v169
  %v171 = vpop.f32.mrf.mxu0
  %v172 = vpop.f32.mrf.mxu0
  %v173 = vadd.f32 %v52, %v172
  %v174 = vpop.f32.mrf.mxu0
  %175 = vmatprep.mubr.bf16.mxu0 0
  %176 = vmatmul.mubr.bf16.gmra.mxu0 %v95
  %v177 = vpop.f32.mrf.mxu0
  %v178 = vadd.f32 %v52, %v177
  %v179 = vpop.f32.mrf.mxu0
  %v180 = vpop.f32.mrf.mxu0
  %v181 = vadd.f32 %v52, %v180
  %v182 = vpop.f32.mrf.mxu0
  %183 = vmatprep.mubr.bf16.mxu0 0
  %184 = vmatmul.mubr.bf16.gmra.mxu0 %v98
  %v185 = vpop.f32.mrf.mxu0
  %v186 = vadd.f32 %v52, %v185
  %v187 = vpop.f32.mrf.mxu0
  %v188 = vpop.f32.mrf.mxu0
  %v189 = vadd.f32 %v52, %v188
  %v190 = vpop.f32.mrf.mxu0
  %191 = vmatprep.mubr.bf16.mxu0 0
  %192 = vmatmul.mubr.bf16.gmra.mxu0 %v101
  %v193 = vpop.f32.mrf.mxu0
  %v194 = vadd.f32 %v52, %v193
  %v195 = vpop.f32.mrf.mxu0
  %v196 = vpop.f32.mrf.mxu0
  %v197 = vadd.f32 %v52, %v196
  %v198 = vpop.f32.mrf.mxu0
  %199 = vdwg.mxu0
  %vm200 = vcmask 785408
  %201 = vst.msk [vmem:[%s3] sm:$0xff] %vm200, %v138
  %202 = vst.msk [vmem:[%s3 + $0x8] sm:$0xff] %vm200, %v141
  %203 = vst.msk [vmem:[%s3 + $0x10] sm:$0xff] %vm200, %v146
  %204 = vst.msk [vmem:[%s3 + $0x18] sm:$0xff] %vm200, %v149
  %205 = vst.msk [vmem:[%s3 + $0x20] sm:$0xff] %vm200, %v154
  %206 = vst.msk [vmem:[%s3 + $0x28] sm:$0xff] %vm200, %v157
  %207 = vst.msk [vmem:[%s3 + $0x30] sm:$0xff] %vm200, %v162
  %208 = vst.msk [vmem:[%s3 + $0x38] sm:$0xff] %vm200, %v165
  %209 = vst.msk [vmem:[%s3 + $0x40] sm:$0xff] %vm200, %v170
  %210 = vst.msk [vmem:[%s3 + $0x48] sm:$0xff] %vm200, %v173
  %211 = vst.msk [vmem:[%s3 + $0x50] sm:$0xff] %vm200, %v178
  %212 = vst.msk [vmem:[%s3 + $0x58] sm:$0xff] %vm200, %v181
  %213 = vst.msk [vmem:[%s3 + $0x60] sm:$0xff] %vm200, %v186
  %214 = vst.msk [vmem:[%s3 + $0x68] sm:$0xff] %vm200, %v189
  %215 = vst.msk [vmem:[%s3 + $0x70] sm:$0xff] %vm200, %v194
  %216 = vst.msk [vmem:[%s3 + $0x78] sm:$0xff] %vm200, %v197
  // Predicated region
  $region14: #{tpu_custom_call.1} parent=0 // pred_check
    _
  $region15: #{tpu_custom_call.1} parent=0 // pred_check_branch
    %218 = sbr.rel (0) target = $region17
  $region16: #{tpu_custom_call.1} parent=0 // pred_region
    _
  $region17: #{tpu_custom_call.1} parent=0 // pred_fallthru
    _
  // Predicated region
  $region18: #{tpu_custom_call.1} parent=0 // pred_check
    _
  $region19: #{tpu_custom_call.1} parent=0 // pred_check_branch
    %220 = sbr.rel (0) target = $region21
  $region20: #{tpu_custom_call.1} parent=0 // pred_region
    _
  $region21: #{tpu_custom_call.1} parent=0 // pred_fallthru
    _

</llo_original>
